<compile_context>
chip_gen: v7x
topology: tpu7x:2x2x1
jax: 0.10.0
libtpu: 0.0.40
codegen_flags: <defaults>
</compile_context>

<pallas_src>
import functools

import jax
import jax.numpy as jnp
from jax.experimental import pallas as pl
from jax.experimental.pallas import tpu as pltpu


def _round_up(x, m):
    return ((x + m - 1) // m) * m


_TB_MAX = 128  # max batch rows per grid step


def _choose_tb(b):
    """Pick the batch tile: as large as possible (<=128), sublane-aligned,
    but keep >=2 grid steps when the batch allows it (v7x has 2 TensorCores)."""
    tb = min(_TB_MAX, _round_up(b, 8))
    if _round_up(b, tb) // tb < 2 and tb > 8:
        tb = max(8, _round_up((b + 1) // 2, 8))
    return tb


# ----------------------------------------------------------------------------
# Fused Pallas kernel: one (TB, S) batch tile of the whole forward pass
# ----------------------------------------------------------------------------
def _kv_encoding_kernel(keys_ref, vals_ref, twc1_ref, wvc_ref, bvc_ref, bc_ref,
                        out_ref, *, seq_len):
    """Per grid step:
      keys_ref : (TB, S)   int32   key indices
      vals_ref : (TB, S)   float32 values (NaN allowed)
      twc1_ref : (NKp, O)  float32 precomputed  table_padded @ wc1
      wvc_ref  : (1, O)    float32 precomputed  wv @ wc2
      bvc_ref  : (1, O)    float32 precomputed  bv @ wc2
      bc_ref   : (1, O)    float32 fc_combined bias
      out_ref  : (TB, O)   float32 output block
    """
    tb = out_ref.shape[0]
    nkp = twc1_ref.shape[0]

    keys = keys_ref[...]                              # (TB, S) int32
    vals = vals_ref[...]                              # (TB, S) f32

    nan_mask = jnp.isnan(vals)
    mask = nan_mask.astype(jnp.float32)               # (TB, S)
    vals_clean = jnp.where(nan_mask, 0.0, vals)       # (TB, S)

    # --- per-row reductions over the (tiny) sequence axis ---------------------
    m_sum = jnp.sum(mask, axis=1, keepdims=True)                  # (TB, 1)
    vm_sum = jnp.sum(mask * vals_clean, axis=1, keepdims=True)    # (TB, 1)

    # row-wise 1/(mask_sum + 1e-5) on the EUP (approx reciprocal is free-ish)
    inv_denom = pl.reciprocal(m_sum + 1e-5, approx=True)          # (TB, 1)

    # --- masked key-count histogram (TB, NKp), accumulated over S on the VPU --
    key_iota = jax.lax.broadcasted_iota(jnp.int32, (tb, nkp), 1)  # hoisted
    counts = jnp.zeros((tb, nkp), jnp.float32)
    for s in range(seq_len):                      # static unroll; S is small
        k_s = keys[:, s:s + 1]                    # (TB, 1)
        m_s = mask[:, s:s + 1]                    # (TB, 1)
        counts = counts + (key_iota == k_s).astype(jnp.float32) * m_s

    # fold the row-wise 1/denom into the histogram before the single matmul
    counts_scaled = counts * inv_denom                            # (TB, NKp)

    # --- embedding path: ONE MXU matmul against the precomputed table@wc1 -----
    emb_out = jnp.dot(counts_scaled, twc1_ref[...],
                      preferred_element_type=jnp.float32)         # (TB, O)

    # --- rank-1 fc_value path (value_dim == 1), folded through wc2 at init ----
    proc_out = (vm_sum * inv_denom) * wvc_ref[...] \
             + (m_sum * inv_denom) * bvc_ref[...]                 # (TB, O)

    out_ref[...] = jnp.maximum(emb_out + proc_out + bc_ref[...], 0.0)


@functools.lru_cache(maxsize=None)
def _get_kv_encoding_call(bp, tb, seq_len, nkp, o_dim):
    kernel = functools.partial(_kv_encoding_kernel, seq_len=seq_len)
    return pl.pallas_call(
        kernel,
        out_shape=jax.ShapeDtypeStruct((bp, o_dim), jnp.float32),
        grid_spec=pltpu.PrefetchScalarGridSpec(
            num_scalar_prefetch=0,
            grid=(bp // tb,),
            in_specs=[
                pl.BlockSpec((tb, seq_len), lambda i: (i, 0)),    # keys
                pl.BlockSpec((tb, seq_len), lambda i: (i, 0)),    # values
                pl.BlockSpec((nkp, o_dim), lambda i: (0, 0)),     # table @ wc1
                pl.BlockSpec((1, o_dim), lambda i: (0, 0)),       # wv @ wc2
                pl.BlockSpec((1, o_dim), lambda i: (0, 0)),       # bv @ wc2
                pl.BlockSpec((1, o_dim), lambda i: (0, 0)),       # bc
            ],
            out_specs=pl.BlockSpec((tb, o_dim), lambda i: (i, 0)),
        ),
        compiler_params=pltpu.CompilerParams(
            dimension_semantics=("parallel",)),
    )


# ----------------------------------------------------------------------------
# Parameters (PyTorch-default-style inits; kernel-friendly precomputes at init)
# ----------------------------------------------------------------------------
def init_params(key, num_keys=47, value_dim=1, embedding_dim=128, output_dim=128):
    assert value_dim == 1  # module default; fc_value consumes a scalar per slot
    k_emb, k_wv, k_bv, k_wc, k_bc = jax.random.split(key, 5)
    e, o = embedding_dim, output_dim

    # nn.Embedding default init: N(0, 1)
    table = jax.random.normal(k_emb, (num_keys, e), jnp.float32)

    # nn.Linear default init: U(-1/sqrt(fan_in), 1/sqrt(fan_in)), weights stored transposed
    lim_v = 1.0 / (value_dim ** 0.5)
    wv = jax.random.uniform(k_wv, (1, e), jnp.float32, -lim_v, lim_v)
    bv = jax.random.uniform(k_bv, (1, e), jnp.float32, -lim_v, lim_v)

    lim_c = 1.0 / ((2 * e) ** 0.5)
    wc = jax.random.uniform(k_wc, (2 * e, o), jnp.float32, -lim_c, lim_c)
    bc = jax.random.uniform(k_bc, (1, o), jnp.float32, -lim_c, lim_c)

    # --- one-time kernel-friendly precomputes ---------------------------------
    nkp = _round_up(num_keys, 128)
    wc1, wc2 = wc[:e], wc[e:]
    # (NKp, O): zero-padded table folded through the first half of fc_combined
    table_wc1 = jnp.zeros((nkp, o), jnp.float32).at[:num_keys].set(table @ wc1)
    # rank-1 fc_value path folded through the second half of fc_combined
    wv_wc2 = wv @ wc2   # (1, O)
    bv_wc2 = bv @ wc2   # (1, O)

    return {
        # raw params (used by the pure-JAX reference)
        'table': table, 'wv': wv, 'bv': bv, 'wc': wc, 'bc': bc,
        # kernel-ready precomputes
        'table_wc1': table_wc1, 'wv_wc2': wv_wc2, 'bv_wc2': bv_wc2,
    }


# ----------------------------------------------------------------------------
# Forward pass (jit-able end to end)
# ----------------------------------------------------------------------------
def forward(params, keys, values):
    """keys: (B, S) int, values: (B, S) float (NaN allowed) -> (B, O) float32."""
    b, s = keys.shape
    nkp, o_dim = params['table_wc1'].shape

    tb = _choose_tb(b)
    bp = _round_up(b, tb)

    keys_p = keys.astype(jnp.int32)
    vals_p = values.astype(jnp.float32)
    if bp != b:
        # Tiny pad of the (B, S) inputs only; padded rows have mask==0 and are
        # sliced off below.  TODO(synk): replace with in-kernel tail masking to
        # drop even this small copy for very large batches.
        keys_p = jnp.pad(keys_p, ((0, bp - b), (0, 0)))
        vals_p = jnp.pad(vals_p, ((0, bp - b), (0, 0)))

    fn = _get_kv_encoding_call(bp, tb, s, nkp, o_dim)
    out = fn(keys_p, vals_p, params['table_wc1'],
             params['wv_wc2'], params['bv_wc2'], params['bc'])
    return out[:b] if bp != b else out


# ----------------------------------------------------------------------------
# Pure-JAX reference (mirrors the PyTorch forward exactly), for validation
# ----------------------------------------------------------------------------
def ref_forward(params, keys, values):
    keys = keys.astype(jnp.int32)
    values = values.astype(jnp.float32)
    e = params['wv'].shape[1]
    mask = jnp.isnan(values).astype(jnp.float32)                       # (B, S)
    emb = params['table'][keys]                                        # (B, S, E)
    vals_clean = jnp.where(jnp.isnan(values), 0.0, values)
    proc = vals_clean[..., None] * params['wv'][0] + params['bv'][0]   # (B, S, E)
    combined = jnp.concatenate([emb, proc], axis=-1) * mask[..., None]
    combined_sum = combined.sum(axis=1)                                # (B, 2E)
    mask_sum = mask.sum(axis=1, keepdims=True)                         # (B, 1)
    combined = combined_sum / (mask_sum + 1e-5)
    return jnp.maximum(combined @ params['wc'] + params['bc'][0], 0.0)


if __name__ == "__main__":
    key = jax.random.PRNGKey(0)
    k_param, k_keys, k_vals, k_nan, k_keys2, k_vals2, k_nan2 = jax.random.split(key, 7)

    NUM_KEYS, E, O = 47, 128, 128
    params = init_params(k_param, num_keys=NUM_KEYS, value_dim=1,
                         embedding_dim=E, output_dim=O)

    fwd = jax.jit(forward)

    # --- small-shape test (B=2, S=8) -----------------------------------------
    B, S = 2, 8
    keys = jax.random.randint(k_keys, (B, S), 0, NUM_KEYS, dtype=jnp.int32)
    values = jax.random.normal(k_vals, (B, S), jnp.float32)
    # NaN positions are the "counted" slots in this module's mask convention.
    values = jnp.where(jax.random.bernoulli(k_nan, 0.5, (B, S)),
                       jnp.float32(jnp.nan), values)

    out = jax.block_until_ready(fwd(params, keys, values))
    assert out.shape == (B, O), out.shape
    assert bool(jnp.all(jnp.isfinite(out)))
    ref = ref_forward(params, keys, values)
    assert bool(jnp.allclose(out, ref, rtol=2e-2, atol=2e-2)), \
        float(jnp.max(jnp.abs(out - ref)))

    # --- larger batch test (exercises TB=128 tiles and a multi-step grid) -----
    B2 = 200
    keys2 = jax.random.randint(k_keys2, (B2, S), 0, NUM_KEYS, dtype=jnp.int32)
    values2 = jax.random.normal(k_vals2, (B2, S), jnp.float32)
    values2 = jnp.where(jax.random.bernoulli(k_nan2, 0.5, (B2, S)),
                        jnp.float32(jnp.nan), values2)

    out2 = jax.block_until_ready(fwd(params, keys2, values2))
    assert out2.shape == (B2, O), out2.shape
    assert bool(jnp.all(jnp.isfinite(out2)))
    ref2 = ref_forward(params, keys2, values2)
    assert bool(jnp.allclose(out2, ref2, rtol=2e-2, atol=2e-2)), \
        float(jnp.max(jnp.abs(out2 - ref2)))

    print("KERNEL_OK")
</pallas_src>

<mosaic_0001>
module attributes {stable_mosaic.version = 11 : i64} {
  func.func @_kv_encoding_kernel(%arg0: i32, %arg1: memref<8x8xi32, #tpu.memory_space<vmem>>, %arg2: memref<8x8xf32, #tpu.memory_space<vmem>>, %arg3: memref<128x128xf32, #tpu.memory_space<vmem>>, %arg4: memref<1x128xf32, #tpu.memory_space<vmem>>, %arg5: memref<1x128xf32, #tpu.memory_space<vmem>>, %arg6: memref<1x128xf32, #tpu.memory_space<vmem>>, %arg7: memref<8x128xf32, #tpu.memory_space<vmem>>) attributes {dimension_semantics = [#tpu.dimension_semantics<parallel>], iteration_bounds = array<i64: 1>, scalar_prefetch = 0 : i64, scratch_operands = 0 : i64, tpu.core_type = #tpu.core_type<tc>, window_params = [{transform_indices = @transform_0, window_bounds = array<i64: 8, 8>}, {transform_indices = @transform_1, window_bounds = array<i64: 8, 8>}, {pipeline_mode = #tpu.pipeline_mode<synchronous>, transform_indices = @transform_2, window_bounds = array<i64: 128, 128>}, {pipeline_mode = #tpu.pipeline_mode<synchronous>, transform_indices = @transform_3, window_bounds = array<i64: 1, 128>}, {pipeline_mode = #tpu.pipeline_mode<synchronous>, transform_indices = @transform_4, window_bounds = array<i64: 1, 128>}, {pipeline_mode = #tpu.pipeline_mode<synchronous>, transform_indices = @transform_5, window_bounds = array<i64: 1, 128>}, {transform_indices = @transform_6, window_bounds = array<i64: 8, 128>}]} {
    %c0 = arith.constant 0 : index
    %c0_0 = arith.constant 0 : index
    %0 = vector.load %arg1[%c0, %c0_0] : memref<8x8xi32, #tpu.memory_space<vmem>>, vector<8x8xi32>
    %c0_1 = arith.constant 0 : index
    %c0_2 = arith.constant 0 : index
    %1 = vector.load %arg2[%c0_1, %c0_2] : memref<8x8xf32, #tpu.memory_space<vmem>>, vector<8x8xf32>
    %2 = arith.cmpf one, %1, %1 : vector<8x8xf32>
    %3 = arith.extui %2 : vector<8x8xi1> to vector<8x8xi32>
    %4 = arith.sitofp %3 : vector<8x8xi32> to vector<8x8xf32>
    %cst = arith.constant 0.000000e+00 : f32
    %5 = vector.broadcast %cst : f32 to vector<8x8xf32>
    %6 = arith.select %2, %5, %1 : vector<8x8xi1>, vector<8x8xf32>
    %cst_3 = arith.constant dense<0.000000e+00> : vector<8xf32>
    %7 = vector.multi_reduction <add>, %4, %cst_3 [1] : vector<8x8xf32> to vector<8xf32>
    %8 = vector.shape_cast %7 : vector<8xf32> to vector<8x1xf32>
    %9 = arith.mulf %4, %6 : vector<8x8xf32>
    %cst_4 = arith.constant dense<0.000000e+00> : vector<8xf32>
    %10 = vector.multi_reduction <add>, %9, %cst_4 [1] : vector<8x8xf32> to vector<8xf32>
    %11 = vector.shape_cast %10 : vector<8xf32> to vector<8x1xf32>
    %cst_5 = arith.constant 9.99999974E-6 : f32
    %12 = vector.broadcast %cst_5 : f32 to vector<8x1xf32>
    %13 = arith.addf %8, %12 : vector<8x1xf32>
    %14 = tpu.reciprocal %13 {approx = true} : vector<8x1xf32> -> vector<8x1xf32>
    %15 = tpu.iota {dimensions = array<i32: 1>} : vector<8x128xi32>
    %cst_6 = arith.constant 0.000000e+00 : f32
    %16 = vector.broadcast %cst_6 : f32 to vector<8x128xf32>
    %17 = vector.extract_strided_slice %0 {offsets = [0, 0], sizes = [8, 1], strides = [1, 1]} : vector<8x8xi32> to vector<8x1xi32>
    %18 = vector.extract_strided_slice %4 {offsets = [0, 0], sizes = [8, 1], strides = [1, 1]} : vector<8x8xf32> to vector<8x1xf32>
    %19 = vector.broadcast %17 : vector<8x1xi32> to vector<8x128xi32>
    %20 = arith.cmpi eq, %15, %19 : vector<8x128xi32>
    %21 = arith.extui %20 : vector<8x128xi1> to vector<8x128xi32>
    %22 = arith.sitofp %21 : vector<8x128xi32> to vector<8x128xf32>
    %23 = vector.broadcast %18 : vector<8x1xf32> to vector<8x128xf32>
    %24 = arith.mulf %22, %23 : vector<8x128xf32>
    %25 = arith.addf %16, %24 : vector<8x128xf32>
    %26 = vector.extract_strided_slice %0 {offsets = [0, 1], sizes = [8, 1], strides = [1, 1]} : vector<8x8xi32> to vector<8x1xi32>
    %27 = vector.extract_strided_slice %4 {offsets = [0, 1], sizes = [8, 1], strides = [1, 1]} : vector<8x8xf32> to vector<8x1xf32>
    %28 = vector.broadcast %26 : vector<8x1xi32> to vector<8x128xi32>
    %29 = arith.cmpi eq, %15, %28 : vector<8x128xi32>
    %30 = arith.extui %29 : vector<8x128xi1> to vector<8x128xi32>
    %31 = arith.sitofp %30 : vector<8x128xi32> to vector<8x128xf32>
    %32 = vector.broadcast %27 : vector<8x1xf32> to vector<8x128xf32>
    %33 = arith.mulf %31, %32 : vector<8x128xf32>
    %34 = arith.addf %25, %33 : vector<8x128xf32>
    %35 = vector.extract_strided_slice %0 {offsets = [0, 2], sizes = [8, 1], strides = [1, 1]} : vector<8x8xi32> to vector<8x1xi32>
    %36 = vector.extract_strided_slice %4 {offsets = [0, 2], sizes = [8, 1], strides = [1, 1]} : vector<8x8xf32> to vector<8x1xf32>
    %37 = vector.broadcast %35 : vector<8x1xi32> to vector<8x128xi32>
    %38 = arith.cmpi eq, %15, %37 : vector<8x128xi32>
    %39 = arith.extui %38 : vector<8x128xi1> to vector<8x128xi32>
    %40 = arith.sitofp %39 : vector<8x128xi32> to vector<8x128xf32>
    %41 = vector.broadcast %36 : vector<8x1xf32> to vector<8x128xf32>
    %42 = arith.mulf %40, %41 : vector<8x128xf32>
    %43 = arith.addf %34, %42 : vector<8x128xf32>
    %44 = vector.extract_strided_slice %0 {offsets = [0, 3], sizes = [8, 1], strides = [1, 1]} : vector<8x8xi32> to vector<8x1xi32>
    %45 = vector.extract_strided_slice %4 {offsets = [0, 3], sizes = [8, 1], strides = [1, 1]} : vector<8x8xf32> to vector<8x1xf32>
    %46 = vector.broadcast %44 : vector<8x1xi32> to vector<8x128xi32>
    %47 = arith.cmpi eq, %15, %46 : vector<8x128xi32>
    %48 = arith.extui %47 : vector<8x128xi1> to vector<8x128xi32>
    %49 = arith.sitofp %48 : vector<8x128xi32> to vector<8x128xf32>
    %50 = vector.broadcast %45 : vector<8x1xf32> to vector<8x128xf32>
    %51 = arith.mulf %49, %50 : vector<8x128xf32>
    %52 = arith.addf %43, %51 : vector<8x128xf32>
    %53 = vector.extract_strided_slice %0 {offsets = [0, 4], sizes = [8, 1], strides = [1, 1]} : vector<8x8xi32> to vector<8x1xi32>
    %54 = vector.extract_strided_slice %4 {offsets = [0, 4], sizes = [8, 1], strides = [1, 1]} : vector<8x8xf32> to vector<8x1xf32>
    %55 = vector.broadcast %53 : vector<8x1xi32> to vector<8x128xi32>
    %56 = arith.cmpi eq, %15, %55 : vector<8x128xi32>
    %57 = arith.extui %56 : vector<8x128xi1> to vector<8x128xi32>
    %58 = arith.sitofp %57 : vector<8x128xi32> to vector<8x128xf32>
    %59 = vector.broadcast %54 : vector<8x1xf32> to vector<8x128xf32>
    %60 = arith.mulf %58, %59 : vector<8x128xf32>
    %61 = arith.addf %52, %60 : vector<8x128xf32>
    %62 = vector.extract_strided_slice %0 {offsets = [0, 5], sizes = [8, 1], strides = [1, 1]} : vector<8x8xi32> to vector<8x1xi32>
    %63 = vector.extract_strided_slice %4 {offsets = [0, 5], sizes = [8, 1], strides = [1, 1]} : vector<8x8xf32> to vector<8x1xf32>
    %64 = vector.broadcast %62 : vector<8x1xi32> to vector<8x128xi32>
    %65 = arith.cmpi eq, %15, %64 : vector<8x128xi32>
    %66 = arith.extui %65 : vector<8x128xi1> to vector<8x128xi32>
    %67 = arith.sitofp %66 : vector<8x128xi32> to vector<8x128xf32>
    %68 = vector.broadcast %63 : vector<8x1xf32> to vector<8x128xf32>
    %69 = arith.mulf %67, %68 : vector<8x128xf32>
    %70 = arith.addf %61, %69 : vector<8x128xf32>
    %71 = vector.extract_strided_slice %0 {offsets = [0, 6], sizes = [8, 1], strides = [1, 1]} : vector<8x8xi32> to vector<8x1xi32>
    %72 = vector.extract_strided_slice %4 {offsets = [0, 6], sizes = [8, 1], strides = [1, 1]} : vector<8x8xf32> to vector<8x1xf32>
    %73 = vector.broadcast %71 : vector<8x1xi32> to vector<8x128xi32>
    %74 = arith.cmpi eq, %15, %73 : vector<8x128xi32>
    %75 = arith.extui %74 : vector<8x128xi1> to vector<8x128xi32>
    %76 = arith.sitofp %75 : vector<8x128xi32> to vector<8x128xf32>
    %77 = vector.broadcast %72 : vector<8x1xf32> to vector<8x128xf32>
    %78 = arith.mulf %76, %77 : vector<8x128xf32>
    %79 = arith.addf %70, %78 : vector<8x128xf32>
    %80 = vector.extract_strided_slice %0 {offsets = [0, 7], sizes = [8, 1], strides = [1, 1]} : vector<8x8xi32> to vector<8x1xi32>
    %81 = vector.extract_strided_slice %4 {offsets = [0, 7], sizes = [8, 1], strides = [1, 1]} : vector<8x8xf32> to vector<8x1xf32>
    %82 = vector.broadcast %80 : vector<8x1xi32> to vector<8x128xi32>
    %83 = arith.cmpi eq, %15, %82 : vector<8x128xi32>
    %84 = arith.extui %83 : vector<8x128xi1> to vector<8x128xi32>
    %85 = arith.sitofp %84 : vector<8x128xi32> to vector<8x128xf32>
    %86 = vector.broadcast %81 : vector<8x1xf32> to vector<8x128xf32>
    %87 = arith.mulf %85, %86 : vector<8x128xf32>
    %88 = arith.addf %79, %87 : vector<8x128xf32>
    %89 = vector.broadcast %14 : vector<8x1xf32> to vector<8x128xf32>
    %90 = arith.mulf %88, %89 : vector<8x128xf32>
    %c0_7 = arith.constant 0 : index
    %c0_8 = arith.constant 0 : index
    %91 = vector.load %arg3[%c0_7, %c0_8] : memref<128x128xf32, #tpu.memory_space<vmem>>, vector<128x128xf32>
    %cst_9 = arith.constant dense<0.000000e+00> : vector<8x128xf32>
    %92 = tpu.matmul %90, %91, %cst_9 {dimension_numbers = #tpu.dot_dimension_numbers<[1], [0], [0], [1], [0, 0, 1, 1], [], []>} : vector<8x128xf32>, vector<128x128xf32>, vector<8x128xf32> -> vector<8x128xf32>
    %93 = arith.mulf %11, %14 : vector<8x1xf32>
    %c0_10 = arith.constant 0 : index
    %c0_11 = arith.constant 0 : index
    %94 = vector.load %arg4[%c0_10, %c0_11] : memref<1x128xf32, #tpu.memory_space<vmem>>, vector<1x128xf32>
    %95 = vector.broadcast %93 : vector<8x1xf32> to vector<8x128xf32>
    %96 = vector.broadcast %94 : vector<1x128xf32> to vector<8x128xf32>
    %97 = arith.mulf %95, %96 : vector<8x128xf32>
    %98 = arith.mulf %8, %14 : vector<8x1xf32>
    %c0_12 = arith.constant 0 : index
    %c0_13 = arith.constant 0 : index
    %99 = vector.load %arg5[%c0_12, %c0_13] : memref<1x128xf32, #tpu.memory_space<vmem>>, vector<1x128xf32>
    %100 = vector.broadcast %98 : vector<8x1xf32> to vector<8x128xf32>
    %101 = vector.broadcast %99 : vector<1x128xf32> to vector<8x128xf32>
    %102 = arith.mulf %100, %101 : vector<8x128xf32>
    %103 = arith.addf %97, %102 : vector<8x128xf32>
    %104 = arith.addf %92, %103 : vector<8x128xf32>
    %c0_14 = arith.constant 0 : index
    %c0_15 = arith.constant 0 : index
    %105 = vector.load %arg6[%c0_14, %c0_15] : memref<1x128xf32, #tpu.memory_space<vmem>>, vector<1x128xf32>
    %106 = vector.broadcast %105 : vector<1x128xf32> to vector<8x128xf32>
    %107 = arith.addf %104, %106 : vector<8x128xf32>
    %cst_16 = arith.constant 0.000000e+00 : f32
    %108 = vector.broadcast %cst_16 : f32 to vector<8x128xf32>
    %109 = arith.maximumf %107, %108 : vector<8x128xf32>
    %c0_17 = arith.constant 0 : index
    %c0_18 = arith.constant 0 : index
    %110 = vector.load %arg7[%c0_17, %c0_18] : memref<8x128xf32, #tpu.memory_space<vmem>>, vector<8x128xf32>
    tpu.vector_store %arg7[%c0_17, %c0_18], %109 {strides = array<i32>} : memref<8x128xf32, #tpu.memory_space<vmem>>, vector<8x128xf32>,
    return
  }
  func.func @transform_0(%arg0: i32) -> (i32, i32) {
    %c0_i32 = arith.constant 0 : i32
    %c0_i32_0 = arith.constant 0 : i32
    return %arg0, %c0_i32 : i32, i32
  }
  func.func @transform_1(%arg0: i32) -> (i32, i32) {
    %c0_i32 = arith.constant 0 : i32
    %c0_i32_0 = arith.constant 0 : i32
    return %arg0, %c0_i32 : i32, i32
  }
  func.func @transform_2(%arg0: i32) -> (i32, i32) {
    %c0_i32 = arith.constant 0 : i32
    %c0_i32_0 = arith.constant 0 : i32
    %c0_i32_1 = arith.constant 0 : i32
    return %c0_i32, %c0_i32_0 : i32, i32
  }
  func.func @transform_3(%arg0: i32) -> (i32, i32) {
    %c0_i32 = arith.constant 0 : i32
    %c0_i32_0 = arith.constant 0 : i32
    %c0_i32_1 = arith.constant 0 : i32
    return %c0_i32, %c0_i32_0 : i32, i32
  }
  func.func @transform_4(%arg0: i32) -> (i32, i32) {
    %c0_i32 = arith.constant 0 : i32
    %c0_i32_0 = arith.constant 0 : i32
    %c0_i32_1 = arith.constant 0 : i32
    return %c0_i32, %c0_i32_0 : i32, i32
  }
  func.func @transform_5(%arg0: i32) -> (i32, i32) {
    %c0_i32 = arith.constant 0 : i32
    %c0_i32_0 = arith.constant 0 : i32
    %c0_i32_1 = arith.constant 0 : i32
    return %c0_i32, %c0_i32_0 : i32, i32
  }
  func.func @transform_6(%arg0: i32) -> (i32, i32) {
    %c0_i32 = arith.constant 0 : i32
    %c0_i32_0 = arith.constant 0 : i32
    return %arg0, %c0_i32 : i32, i32
  }
}

</mosaic_0001>

<llo_original>
// kernel: forward.1
$region0: #{forward.1}
  #allocation0 [shape = 'u32[]', space=smem, size = 0x4, offset = 0x4, fixed_abs, tag = 'smem constant byte address 0x4 - core index']
  #allocation1 [shape = 'u32[144,128]{1,0:T(1,128)}', space=vmem, size = 0x12000, scoped, tag = 'internal scratch']
  %s0 = inlined_call_operand.vmem [shape: s32[8,8], index: 0, kind: input, shape index: {}]
  %s1 = inlined_call_operand.vmem [shape: f32[8,8], index: 1, kind: input, shape index: {}]
  %s2 = inlined_call_operand.hbm [shape: f32[128,128], index: 2, kind: input, shape index: {}]
  %s3 = inlined_call_operand.vmem [shape: f32[1,128], index: 3, kind: input, shape index: {}]
  %s4 = inlined_call_operand.vmem [shape: f32[1,128], index: 4, kind: input, shape index: {}]
  %s5 = inlined_call_operand.vmem [shape: f32[1,128], index: 5, kind: input, shape index: {}]
  %s6 = inlined_call_operand.vmem [shape: f32[8,128], index: 6, kind: output, shape index: {}]
  %s7 = sld [smem:[#allocation0]]
  $region38: #{forward.1} parent=0
    _
  %s9 = ssub.s32 1, %s7
  %s10 = scalar_select 0, %s9, %s7
  $region1: #{forward.1} parent=0
    #allocation2 [shape = 'u8[65536]{0}', space=vmem, size = 0x10000, scoped, tag = 'input window, operand 2, single buffered']
    #allocation3 [shape = 's32[1]{0}', space=sflag, size = 0x4, scoped, tag = 'scoped memory for forward.1']
    %11 = vsyncpa [#allocation3], 0
    // Predicated region
    $region2: #{forward.1} parent=1 // pred_check
      _
    $region3: #{forward.1} parent=1 // pred_check_branch
      %13 = sbr.rel (0) target = $region5
    $region4: #{forward.1} parent=1 // pred_region
      _
    $region5: #{forward.1} parent=1 // pred_fallthru
      _
    // Predicated region
    $region6: #{forward.1} parent=1 // pred_check
      _
    $region7: #{forward.1} parent=1 // pred_check_branch
      %15 = sbr.rel (0) target = $region9
    $region8: #{forward.1} parent=1 // pred_region
      _
    $region9: #{forward.1} parent=1 // pred_fallthru
      _
    // Predicated region
    $region10: #{forward.1} parent=1 // pred_check
      _
    $region11: #{forward.1} parent=1 // pred_check_branch
      %17 = sbr.rel (0) target = $region13
    $region12: #{forward.1} parent=1 // pred_region
      %s19 = ssub.s32 2048, 2048
      %20 = vsyncadd [#allocation3], %s19
      %s21 = sshll.u32 [#allocation2], 4
      %s22 = int_to_ptr.vmem [resolvable:$true] %s21
      %27 = dma.hbm_to_vmem [thread:$0]  %s2, 2048, %s22, [#allocation3], 128, 128, 8
    $region13: #{forward.1} parent=1 // pred_fallthru
      _
    // Predicated region
    $region14: #{forward.1} parent=1 // pred_check
      _
    $region15: #{forward.1} parent=1 // pred_check_branch
      %29 = sbr.rel (0) target = $region17
    $region16: #{forward.1} parent=1 // pred_region
      _
    $region17: #{forward.1} parent=1 // pred_fallthru
      _
    // Predicated region
    $region18: #{forward.1} parent=1 // pred_check
      _
    $region19: #{forward.1} parent=1 // pred_check_branch
      %31 = sbr.rel (0) target = $region21
    $region20: #{forward.1} parent=1 // pred_region
      _
    $region21: #{forward.1} parent=1 // pred_fallthru
      _
    // Predicated region
    $region22: #{forward.1} parent=1 // pred_check
      _
    $region23: #{forward.1} parent=1 // pred_check_branch
      %33 = sbr.rel (0) target = $region25
    $region24: #{forward.1} parent=1 // pred_region
      _
    $region25: #{forward.1} parent=1 // pred_fallthru
      _
    // Predicated region
    $region26: #{forward.1} parent=1 // pred_check
      _
    $region27: #{forward.1} parent=1 // pred_check_branch
      %35 = sbr.rel (0) target = $region29
    $region28: #{forward.1} parent=1 // pred_region
      %36 = dma.done [#allocation3], 2048
    $region29: #{forward.1} parent=1 // pred_fallthru
      _
    %v37 = vld [vmem:[%s0] sm:$0xff]
    %v38 = vld [vmem:[%s1] sm:$0xff]
    %vm39 = vcmp.ne.f32.partialorder %v38, %v38
    %v40 = vsel %vm39, 1, 0
    %v41 = vcvt.s32.f32 %v40
    %v42 = vsel %vm39, 0.0, %v38
    %vm43 = vcmask 64512
    %v44 = vsel %vm43, %v41, 0.0
    %45 = vadd.xlane.f32.xlu0 %v44
    %v46 = vpop.xlane.xlu0 %45
    %v47 = vmul.f32 %v41, %v42
    %v48 = vsel %vm43, %v47, 0.0
    %49 = vadd.xlane.f32.xlu0 %v48
    %v50 = vpop.xlane.xlu0 %49
    %v51 = vadd.f32 %v46, 1e-05
    %v52 = vrcp.pop %v51
    %v53 = vlaneseq
    %v54 = vand.u32 %v53, 127
    %55 = vset.pattern.permute.xlu0 0
    %56 = vperm.xlu0 %55, %v37
    %v57 = vpop.permute.xlu0 %56
    %vm58 = vcmp.eq.s32.totalorder %v54, %v57
    %v59 = vsel %vm58, 1, 0
    %v60 = vcvt.s32.f32 %v59
    %62 = vset.pattern.permute.xlu0 0
    %63 = vperm.xlu0 %62, %v41
    %v64 = vpop.permute.xlu0 %63
    %v66 = vmul.f32 %v60, %v64
    %v67 = vadd.f32 %v66, 0.0
    %68 = vset.pattern.permute.xlu0 1
    %69 = vperm.xlu0 %68, %v37
    %v70 = vpop.permute.xlu0 %69
    %vm71 = vcmp.eq.s32.totalorder %v54, %v70
    %v72 = vsel %vm71, 1, 0
    %v73 = vcvt.s32.f32 %v72
    %74 = vset.pattern.permute.xlu0 1
    %75 = vperm.xlu0 %74, %v41
    %v76 = vpop.permute.xlu0 %75
    %v78 = vmul.f32 %v73, %v76
    %v79 = vadd.f32 %v67, %v78
    %80 = vset.pattern.permute.xlu0 2
    %81 = vperm.xlu0 %80, %v37
    %v82 = vpop.permute.xlu0 %81
    %vm83 = vcmp.eq.s32.totalorder %v54, %v82
    %v84 = vsel %vm83, 1, 0
    %v85 = vcvt.s32.f32 %v84
    %86 = vset.pattern.permute.xlu0 2
    %87 = vperm.xlu0 %86, %v41
    %v88 = vpop.permute.xlu0 %87
    %v90 = vmul.f32 %v85, %v88
    %v91 = vadd.f32 %v79, %v90
    %92 = vset.pattern.permute.xlu0 3
    %93 = vperm.xlu0 %92, %v37
    %v94 = vpop.permute.xlu0 %93
    %vm95 = vcmp.eq.s32.totalorder %v54, %v94
    %v96 = vsel %vm95, 1, 0
    %v97 = vcvt.s32.f32 %v96
    %98 = vset.pattern.permute.xlu0 3
    %99 = vperm.xlu0 %98, %v41
    %v100 = vpop.permute.xlu0 %99
    %v102 = vmul.f32 %v97, %v100
    %v103 = vadd.f32 %v91, %v102
    %104 = vset.pattern.permute.xlu0 4
    %105 = vperm.xlu0 %104, %v37
    %v106 = vpop.permute.xlu0 %105
    %vm107 = vcmp.eq.s32.totalorder %v54, %v106
    %v108 = vsel %vm107, 1, 0
    %v109 = vcvt.s32.f32 %v108
    %110 = vset.pattern.permute.xlu0 4
    %111 = vperm.xlu0 %110, %v41
    %v112 = vpop.permute.xlu0 %111
    %v114 = vmul.f32 %v109, %v112
    %v115 = vadd.f32 %v103, %v114
    %116 = vset.pattern.permute.xlu0 5
    %117 = vperm.xlu0 %116, %v37
    %v118 = vpop.permute.xlu0 %117
    %vm119 = vcmp.eq.s32.totalorder %v54, %v118
    %v120 = vsel %vm119, 1, 0
    %v121 = vcvt.s32.f32 %v120
    %122 = vset.pattern.permute.xlu0 5
    %123 = vperm.xlu0 %122, %v41
    %v124 = vpop.permute.xlu0 %123
    %v126 = vmul.f32 %v121, %v124
    %v127 = vadd.f32 %v115, %v126
    %128 = vset.pattern.permute.xlu0 6
    %129 = vperm.xlu0 %128, %v37
    %v130 = vpop.permute.xlu0 %129
    %vm131 = vcmp.eq.s32.totalorder %v54, %v130
    %v132 = vsel %vm131, 1, 0
    %v133 = vcvt.s32.f32 %v132
    %134 = vset.pattern.permute.xlu0 6
    %135 = vperm.xlu0 %134, %v41
    %v136 = vpop.permute.xlu0 %135
    %v138 = vmul.f32 %v133, %v136
    %v139 = vadd.f32 %v127, %v138
    %140 = vset.pattern.permute.xlu0 7
    %141 = vperm.xlu0 %140, %v37
    %v142 = vpop.permute.xlu0 %141
    %vm143 = vcmp.eq.s32.totalorder %v54, %v142
    %v144 = vsel %vm143, 1, 0
    %v145 = vcvt.s32.f32 %v144
    %146 = vset.pattern.permute.xlu0 7
    %147 = vperm.xlu0 %146, %v41
    %v148 = vpop.permute.xlu0 %147
    %v150 = vmul.f32 %v145, %v148
    %v151 = vadd.f32 %v139, %v150
    %v152 = vmul.f32 %v151, %v52
    %v153 = vld [vmem:[#allocation2] sm:$0xff]
    %v154 = vld [vmem:[#allocation2 + $0x8] sm:$0xff]
    %v155 = vld [vmem:[#allocation2 + $0x10] sm:$0xff]
    %v156 = vld [vmem:[#allocation2 + $0x18] sm:$0xff]
    %v157 = vld [vmem:[#allocation2 + $0x20] sm:$0xff]
    %v158 = vld [vmem:[#allocation2 + $0x28] sm:$0xff]
    %v159 = vld [vmem:[#allocation2 + $0x30] sm:$0xff]
    %v160 = vld [vmem:[#allocation2 + $0x38] sm:$0xff]
    %v161 = vld [vmem:[#allocation2 + $0x40] sm:$0xff]
    %v162 = vld [vmem:[#allocation2 + $0x48] sm:$0xff]
    %v163 = vld [vmem:[#allocation2 + $0x50] sm:$0xff]
    %v164 = vld [vmem:[#allocation2 + $0x58] sm:$0xff]
    %v165 = vld [vmem:[#allocation2 + $0x60] sm:$0xff]
    %v166 = vld [vmem:[#allocation2 + $0x68] sm:$0xff]
    %v167 = vld [vmem:[#allocation2 + $0x70] sm:$0xff]
    %v168 = vld [vmem:[#allocation2 + $0x78] sm:$0xff]
    %v169 = vmul.f32 %v50, %v52
    %v170 = vld [vmem:[%s3] sm:$0x1]
    %v172 = vlaneseq
    %v173 = vshrl.u32 %v172, 7
    %v174 = vsub.s32 0, %v173
    %v175 = vrot.slane %v170, %v174
    %v177 = vmul.f32 %v169, %v175
    %v178 = vmul.f32 %v46, %v52
    %v179 = vld [vmem:[%s4] sm:$0x1]
    %v181 = vlaneseq
    %v182 = vshrl.u32 %v181, 7
    %v183 = vsub.s32 0, %v182
    %v184 = vrot.slane %v179, %v183
    %v186 = vmul.f32 %v178, %v184
    %v187 = vadd.f32 %v177, %v186
    %188 = vmatprep.subr.mxu0 0.0
    %189 = vmatpush1.msra.mxu0 %v153
    %190 = vmatprep.subr.mxu0 0.0
    %191 = vmatpush1.msra.mxu0 %v154
    %192 = vmatprep.subr.mxu0 0.0
    %193 = vmatpush1.msra.mxu0 %v155
    %194 = vmatprep.subr.mxu0 0.0
    %195 = vmatpush1.msra.mxu0 %v156
    %196 = vmatprep.subr.mxu0 0.0
    %197 = vmatpush1.msra.mxu0 %v157
    %198 = vmatprep.subr.mxu0 0.0
    %199 = vmatpush1.msra.mxu0 %v158
    %200 = vmatprep.subr.mxu0 0.0
    %201 = vmatpush1.msra.mxu0 %v159
    %202 = vmatprep.subr.mxu0 0.0
    %203 = vmatpush1.msra.mxu0 %v160
    %204 = vmatprep.subr.mxu0 0.0
    %205 = vmatpush1.msra.mxu0 %v161
    %206 = vmatprep.subr.mxu0 0.0
    %207 = vmatpush1.msra.mxu0 %v162
    %208 = vmatprep.subr.mxu0 0.0
    %209 = vmatpush1.msra.mxu0 %v163
    %210 = vmatprep.subr.mxu0 0.0
    %211 = vmatpush1.msra.mxu0 %v164
    %212 = vmatprep.subr.mxu0 0.0
    %213 = vmatpush1.msra.mxu0 %v165
    %214 = vmatprep.subr.mxu0 0.0
    %215 = vmatpush1.msra.mxu0 %v166
    %216 = vmatprep.subr.mxu0 0.0
    %217 = vmatpush1.msra.mxu0 %v167
    %218 = vmatprep.subr.mxu0 0.0
    %219 = vmatpush1.msra.mxu0 %v168
    %220 = vmatprep.subr.mxu0 0.0
    %221 = vmatpush1.msra.mxu0 0.0
    %222 = vmatprep.subr.mxu0 0.0
    %223 = vmatpush1.msra.mxu0 0.0
    %224 = vmatprep.subr.mxu0 0.0
    %225 = vmatpush1.msra.mxu0 0.0
    %226 = vmatprep.subr.mxu0 0.0
    %227 = vmatpush1.msra.mxu0 0.0
    %228 = vmatprep.subr.mxu0 0.0
    %229 = vmatpush1.msra.mxu0 0.0
    %230 = vmatprep.subr.mxu0 0.0
    %231 = vmatpush1.msra.mxu0 0.0
    %232 = vmatprep.subr.mxu0 0.0
    %233 = vmatpush1.msra.mxu0 0.0
    %234 = vmatprep.subr.mxu0 0.0
    %235 = vmatpush1.msra.mxu0 0.0
    %236 = vmatprep.subr.mxu0 0.0
    %237 = vmatpush1.msra.mxu0 0.0
    %238 = vmatprep.subr.mxu0 0.0
    %239 = vmatpush1.msra.mxu0 0.0
    %240 = vmatprep.subr.mxu0 0.0
    %241 = vmatpush1.msra.mxu0 0.0
    %242 = vmatprep.subr.mxu0 0.0
    %243 = vmatpush1.msra.mxu0 0.0
    %244 = vmatprep.subr.mxu0 0.0
    %245 = vmatpush1.msra.mxu0 0.0
    %246 = vmatprep.subr.mxu0 0.0
    %247 = vmatpush1.msra.mxu0 0.0
    %248 = vmatprep.subr.mxu0 0.0
    %249 = vmatpush1.msra.mxu0 0.0
    %250 = vmatprep.subr.mxu0 0.0
    %251 = vmatpush1.msra.mxu0 0.0
    %252 = vmatprep.mubr.f32.mxu0 0.0
    %253 = vmatmul.mubr.f32.gmra.mrb[0].mxu0 %v152
    %v254 = vpop.f32.mrb[0].mxu0
    %v255 = vadd.f32 %v187, %v254
    %v256 = vpop.f32.mrb[0].mxu0
    %257 = vdwg.mxu0
    %v258 = vld [vmem:[%s5] sm:$0x1]
    %v260 = vlaneseq
    %v261 = vshrl.u32 %v260, 7
    %v262 = vsub.s32 0, %v261
    %v263 = vrot.slane %v258, %v262
    %v265 = vadd.f32 %v255, %v263
    %v266 = vmax.f32 %v265, 0.0
    %267 = vst [vmem:[%s6] sm:$0xff] %v266
    // Predicated region
    $region30: #{forward.1} parent=1 // pred_check
      _
    $region31: #{forward.1} parent=1 // pred_check_branch
      %269 = sbr.rel (0) target = $region33
    $region32: #{forward.1} parent=1 // pred_region
      _
    $region33: #{forward.1} parent=1 // pred_fallthru
      _
    // Predicated region
    $region34: #{forward.1} parent=1 // pred_check
      _
    $region35: #{forward.1} parent=1 // pred_check_branch
      %271 = sbr.rel (0) target = $region37
    $region36: #{forward.1} parent=1 // pred_region
      _
    $region37: #{forward.1} parent=1 // pred_fallthru
      _
    %272 = vsyncpa [#allocation3], 1

</llo_original>
